<compile_context>
chip_gen: v6e
topology: v6e:2x2x1
jax: 0.10.0
libtpu: 0.0.40
codegen_flags: <defaults>
</compile_context>

<pallas_src>
import functools

import jax
import jax.numpy as jnp
from jax.experimental import pallas as pl
from jax.experimental.pallas import tpu as pltpu


def _ru(x, m):
    return (x + m - 1) // m * m


# ----------------------------- Pallas kernel --------------------------------
def _lstm_forecast_kernel(x_ref,      # (T*Bp, F_pad) time-major flattened input (row = t*Bp + b)
                          lstm_ref,   # (rows, 4H)    packed [W_ih ; W_hh ; b_ih+b_hh]
                          head_ref,   # (rows, O_pad) packed [W1 ; b1 ; W2 ; b2]
                          out_ref,    # (Bp, O_pad)
                          *, T, Bp, meta):
    H = meta["H"]
    L = meta["L"]
    F_pad = meta["F_pad"]
    whh_r0 = meta["whh_r0"]
    b_row = meta["b_row"]
    b1_row = meta["b1_row"]
    w2_r0 = meta["w2_r0"]
    b2_row = meta["b2_row"]

    # ---- one-off parameter unpack + bf16 casts (outside the serial recurrence) ----
    wih_b = lstm_ref[0:F_pad, :].astype(jnp.bfloat16)              # (F_pad, 4H)
    whh_b = lstm_ref[whh_r0:whh_r0 + H, :].astype(jnp.bfloat16)    # (H, 4H)
    bias = lstm_ref[b_row:b_row + 1, :]                            # (1, 4H)  f32

    # Hoisted, non-recurrent input projection for ALL timesteps at once (single MXU
    # pass, bf16 operands, f32 accumulation) with the combined LSTM bias folded in.
    x_bf = x_ref[...].astype(jnp.bfloat16)                         # (T*Bp, F_pad)
    x_proj = (jnp.dot(x_bf, wih_b, preferred_element_type=jnp.float32)
              + bias)                                              # (T*Bp, 4H) f32

    h = jnp.zeros((Bp, H), jnp.float32)
    c = jnp.zeros((Bp, H), jnp.float32)

    # Serial recurrence, fully unrolled (T static & small).  Each step's slice of
    # x_proj is a whole sublane-aligned (Bp=8, 4H=128) vreg (batch was padded).
    for t in range(T):
        gates = (x_proj[t * Bp:(t + 1) * Bp, :]
                 + jnp.dot(h.astype(jnp.bfloat16), whh_b,
                           preferred_element_type=jnp.float32))    # (Bp, 4H) f32
        # Two full-vreg EUP passes (sigmoid + tanh over all 4H lanes), slice after.
        sig = jax.nn.sigmoid(gates)
        th = jnp.tanh(gates)
        i_g = sig[:, 0 * H:1 * H]
        f_g = sig[:, 1 * H:2 * H]
        g_g = th[:, 2 * H:3 * H]
        o_g = sig[:, 3 * H:4 * H]
        c = f_g * c + i_g * g_g
        h = o_g * jnp.tanh(c)

    # ---- head (dropouts are identity at inference); one-off f32 epilogue ----
    w1 = head_ref[0:H, 0:L]                                        # (H, L)
    b1 = head_ref[b1_row:b1_row + 1, 0:L]                          # (1, L)
    w2 = head_ref[w2_r0:w2_r0 + L, :]                              # (L, O_pad)
    b2 = head_ref[b2_row:b2_row + 1, :]                            # (1, O_pad)
    z = jnp.maximum(jnp.dot(h, w1, preferred_element_type=jnp.float32) + b1, 0.0)
    out_ref[...] = jnp.dot(z, w2, preferred_element_type=jnp.float32) + b2


# ------------------------------ param packing --------------------------------
def pack_params(params):
    """Pack the 7 weight/bias arrays into 2 VMEM-friendly buffers (fewer DMAs).

    In a serving loop this is done once, offline.  All row offsets are 8-aligned
    and the head width is padded to a multiple of 128 lanes (unmasked stores).
    """
    wih_t, whh_t = params["wih_t"], params["whh_t"]    # (F,4H), (H,4H)
    b_lstm = params["b_lstm"]                          # (1,4H)  == b_ih + b_hh
    w1_t, b1 = params["w1_t"], params["b1"]            # (H,L), (1,L)
    w2_t, b2 = params["w2_t"], params["b2"]            # (L,O), (1,O)

    F, H4 = wih_t.shape
    H = whh_t.shape[0]
    L = w1_t.shape[1]
    O = w2_t.shape[1]

    # --- LSTM pack: [W_ih ; W_hh ; bias] along rows, width 4H ---
    F_pad = _ru(F, 8)
    whh_r0 = F_pad
    b_row = F_pad + _ru(H, 8)
    n_lstm_rows = _ru(b_row + 1, 8)
    lstm_pack = jnp.zeros((n_lstm_rows, H4), jnp.float32)
    lstm_pack = lstm_pack.at[0:F, :].set(wih_t)
    lstm_pack = lstm_pack.at[whh_r0:whh_r0 + H, :].set(whh_t)
    lstm_pack = lstm_pack.at[b_row, :].set(b_lstm[0])

    # --- head pack: [W1 ; b1 ; W2 ; b2] along rows, width O_pad (>=128-multiple) ---
    O_pad = max(_ru(L, 128), _ru(O, 128))
    b1_row = _ru(H, 8)
    w2_r0 = b1_row + 8
    b2_row = _ru(w2_r0 + L, 8)
    n_head_rows = _ru(b2_row + 1, 8)
    head_pack = jnp.zeros((n_head_rows, O_pad), jnp.float32)
    head_pack = head_pack.at[0:H, 0:L].set(w1_t)
    head_pack = head_pack.at[b1_row, 0:L].set(b1[0])
    head_pack = head_pack.at[w2_r0:w2_r0 + L, 0:O].set(w2_t)
    head_pack = head_pack.at[b2_row, 0:O].set(b2[0])

    meta = dict(F=F, F_pad=F_pad, H=H, L=L, O=O, O_pad=O_pad,
                whh_r0=whh_r0, b_row=b_row,
                b1_row=b1_row, w2_r0=w2_r0, b2_row=b2_row)
    return lstm_pack, head_pack, meta


# ------------------------------ wrapper --------------------------------------
def lstm_forecast(x, lstm_pack, head_pack, meta):
    """x: (B, T, F) float32. Returns (B, O) float32."""
    B, T, F = x.shape
    assert F == meta["F"]
    F_pad = meta["F_pad"]
    O, O_pad = meta["O"], meta["O_pad"]

    # Pad batch to a full-sublane multiple of 8 (zero rows) and feature dim to the
    # packed W_ih row count, then time-major flatten (row = t*Bp + b).  Tiny one-off
    # XLA data movement outside the recurrence; padded rows/lanes are exact zeros.
    Bp = _ru(max(B, 8), 8)
    xp = jnp.zeros((Bp, T, F_pad), jnp.float32)
    xp = xp.at[:B, :, :F].set(x)
    x2d = jnp.transpose(xp, (1, 0, 2)).reshape(T * Bp, F_pad)

    vmem = pl.BlockSpec(memory_space=pltpu.MemorySpace.VMEM)
    kernel = functools.partial(_lstm_forecast_kernel, T=T, Bp=Bp, meta=meta)
    out_full = pl.pallas_call(
        kernel,
        out_shape=jax.ShapeDtypeStruct((Bp, O_pad), jnp.float32),
        in_specs=[vmem, vmem, vmem],
        out_specs=vmem,
    )(x2d, lstm_pack, head_pack)
    # Slice away padded batch rows / padded output lanes.
    return out_full[:B, :O]


# ------------------------- deterministic param init --------------------------
def init_params(key, input_size, hidden_size, linear_size, pred_length, num_targets):
    ks = jax.random.split(key, 8)
    s = 0.1
    O = pred_length * num_targets
    return {
        # transposed vs. PyTorch storage so the kernel does act @ W
        "wih_t": s * jax.random.normal(ks[0], (input_size, 4 * hidden_size), jnp.float32),
        "whh_t": s * jax.random.normal(ks[1], (hidden_size, 4 * hidden_size), jnp.float32),
        "b_lstm": s * jax.random.normal(ks[2], (1, 4 * hidden_size), jnp.float32),  # b_ih + b_hh
        "w1_t": s * jax.random.normal(ks[3], (hidden_size, linear_size), jnp.float32),
        "b1":   s * jax.random.normal(ks[4], (1, linear_size), jnp.float32),
        "w2_t": s * jax.random.normal(ks[5], (linear_size, O), jnp.float32),
        "b2":   s * jax.random.normal(ks[6], (1, O), jnp.float32),
    }


# ------------------------------ pure-JAX refs ---------------------------------
def reference_forward(x, p, matmul_dtype=jnp.float32):
    """Pure-JAX reference.  matmul_dtype=bf16 mirrors the kernel's MXU operand
    precision (f32 accumulation, f32 gate math); f32 gives the exact module math."""
    B, T, F = x.shape
    H = p["whh_t"].shape[0]
    md = matmul_dtype
    wih = p["wih_t"].astype(md)
    whh = p["whh_t"].astype(md)
    h = jnp.zeros((B, H), jnp.float32)
    c = jnp.zeros((B, H), jnp.float32)
    for t in range(T):
        gates = (jnp.dot(x[:, t, :].astype(md), wih, preferred_element_type=jnp.float32)
                 + p["b_lstm"]
                 + jnp.dot(h.astype(md), whh, preferred_element_type=jnp.float32))
        i_g = jax.nn.sigmoid(gates[:, 0 * H:1 * H])
        f_g = jax.nn.sigmoid(gates[:, 1 * H:2 * H])
        g_g = jnp.tanh(gates[:, 2 * H:3 * H])
        o_g = jax.nn.sigmoid(gates[:, 3 * H:4 * H])
        c = f_g * c + i_g * g_g
        h = o_g * jnp.tanh(c)
    z = jnp.maximum(h @ p["w1_t"] + p["b1"], 0.0)
    return z @ p["w2_t"] + p["b2"]


if __name__ == "__main__":
    # Small shapes consistent with the module's forward:
    #   batch=2, seq=8, input_size=16 features, hidden=32,
    #   linear_size=128, pred_length=24, num_targets=7  -> output (2, 168)
    B, T, F = 2, 8, 16
    H, L = 32, 128
    PRED_LEN, NUM_TARGETS = 24, 7

    key = jax.random.PRNGKey(0)
    kx, kp = jax.random.split(key)
    x = jax.random.normal(kx, (B, T, F), jnp.float32)
    params = init_params(kp, F, H, L, PRED_LEN, NUM_TARGETS)
    lstm_pack, head_pack, meta = pack_params(params)

    out = lstm_forecast(x, lstm_pack, head_pack, meta)
    out = jax.block_until_ready(out)
    assert out.shape == (B, PRED_LEN * NUM_TARGETS)

    # (1) Tight check against a reference with identical matmul-operand precision.
    ref_bf16_ops = reference_forward(x, params, matmul_dtype=jnp.bfloat16)
    assert jnp.allclose(out, ref_bf16_ops, atol=5e-3, rtol=5e-3)

    # (2) Loose check against the exact f32 module semantics (bf16 MXU operands
    #     introduce ~1e-3-level deviations, per the perf review).
    ref_f32 = reference_forward(x, params, matmul_dtype=jnp.float32)
    assert jnp.allclose(out, ref_f32, atol=5e-2, rtol=5e-2)

    print("KERNEL_OK")
</pallas_src>

<mosaic_0001>
module attributes {stable_mosaic.version = 11 : i64} {
  func.func @_lstm_forecast_kernel(%arg0: memref<64x16xf32, #tpu.memory_space<vmem>>, %arg1: memref<56x128xf32, #tpu.memory_space<vmem>>, %arg2: memref<176x256xf32, #tpu.memory_space<vmem>>, %arg3: memref<8x256xf32, #tpu.memory_space<vmem>>) attributes {dimension_semantics = [], scalar_prefetch = 0 : i64, scratch_operands = 0 : i64, tpu.core_type = #tpu.core_type<tc>} {
    %c0 = arith.constant 0 : index
    %c0_0 = arith.constant 0 : index
    %0 = vector.load %arg1[%c0, %c0_0] : memref<56x128xf32, #tpu.memory_space<vmem>>, vector<16x128xf32>
    %1 = arith.truncf %0 : vector<16x128xf32> to vector<16x128xbf16>
    %c16 = arith.constant 16 : index
    %c0_1 = arith.constant 0 : index
    %2 = vector.load %arg1[%c16, %c0_1] : memref<56x128xf32, #tpu.memory_space<vmem>>, vector<32x128xf32>
    %3 = arith.truncf %2 : vector<32x128xf32> to vector<32x128xbf16>
    %c48 = arith.constant 48 : index
    %c0_2 = arith.constant 0 : index
    %4 = vector.load %arg1[%c48, %c0_2] : memref<56x128xf32, #tpu.memory_space<vmem>>, vector<1x128xf32>
    %c0_3 = arith.constant 0 : index
    %c0_4 = arith.constant 0 : index
    %5 = vector.load %arg0[%c0_3, %c0_4] : memref<64x16xf32, #tpu.memory_space<vmem>>, vector<64x16xf32>
    %6 = arith.truncf %5 : vector<64x16xf32> to vector<64x16xbf16>
    %cst = arith.constant dense<0.000000e+00> : vector<64x128xf32>
    %7 = tpu.matmul %6, %1, %cst {dimension_numbers = #tpu.dot_dimension_numbers<[1], [0], [0], [1], [0, 0, 1, 1], [], []>} : vector<64x16xbf16>, vector<16x128xbf16>, vector<64x128xf32> -> vector<64x128xf32>
    %8 = vector.broadcast %4 : vector<1x128xf32> to vector<64x128xf32>
    %9 = arith.addf %7, %8 : vector<64x128xf32>
    %cst_5 = arith.constant 0.000000e+00 : f32
    %10 = vector.broadcast %cst_5 : f32 to vector<8x32xf32>
    %cst_6 = arith.constant 0.000000e+00 : f32
    %11 = vector.broadcast %cst_6 : f32 to vector<8x32xf32>
    %12 = vector.extract_strided_slice %9 {offsets = [0, 0], sizes = [8, 128], strides = [1, 1]} : vector<64x128xf32> to vector<8x128xf32>
    %13 = arith.truncf %10 : vector<8x32xf32> to vector<8x32xbf16>
    %cst_7 = arith.constant dense<0.000000e+00> : vector<8x128xf32>
    %14 = tpu.matmul %13, %3, %cst_7 {dimension_numbers = #tpu.dot_dimension_numbers<[1], [0], [0], [1], [0, 0, 1, 1], [], []>} : vector<8x32xbf16>, vector<32x128xbf16>, vector<8x128xf32> -> vector<8x128xf32>
    %15 = arith.addf %12, %14 : vector<8x128xf32>
    %16 = arith.negf %15 : vector<8x128xf32>
    %17 = math.exp %16 : vector<8x128xf32>
    %cst_8 = arith.constant 1.000000e+00 : f32
    %18 = vector.broadcast %cst_8 : f32 to vector<8x128xf32>
    %19 = arith.addf %18, %17 : vector<8x128xf32>
    %20 = arith.divf %18, %19 : vector<8x128xf32>
    %21 = math.tanh %15 : vector<8x128xf32>
    %22 = vector.extract_strided_slice %20 {offsets = [0, 0], sizes = [8, 32], strides = [1, 1]} : vector<8x128xf32> to vector<8x32xf32>
    %23 = vector.extract_strided_slice %20 {offsets = [0, 32], sizes = [8, 32], strides = [1, 1]} : vector<8x128xf32> to vector<8x32xf32>
    %24 = vector.extract_strided_slice %21 {offsets = [0, 64], sizes = [8, 32], strides = [1, 1]} : vector<8x128xf32> to vector<8x32xf32>
    %25 = vector.extract_strided_slice %20 {offsets = [0, 96], sizes = [8, 32], strides = [1, 1]} : vector<8x128xf32> to vector<8x32xf32>
    %26 = arith.mulf %23, %11 : vector<8x32xf32>
    %27 = arith.mulf %22, %24 : vector<8x32xf32>
    %28 = arith.addf %26, %27 : vector<8x32xf32>
    %29 = math.tanh %28 : vector<8x32xf32>
    %30 = arith.mulf %25, %29 : vector<8x32xf32>
    %31 = vector.extract_strided_slice %9 {offsets = [8, 0], sizes = [8, 128], strides = [1, 1]} : vector<64x128xf32> to vector<8x128xf32>
    %32 = arith.truncf %30 : vector<8x32xf32> to vector<8x32xbf16>
    %cst_9 = arith.constant dense<0.000000e+00> : vector<8x128xf32>
    %33 = tpu.matmul %32, %3, %cst_9 {dimension_numbers = #tpu.dot_dimension_numbers<[1], [0], [0], [1], [0, 0, 1, 1], [], []>} : vector<8x32xbf16>, vector<32x128xbf16>, vector<8x128xf32> -> vector<8x128xf32>
    %34 = arith.addf %31, %33 : vector<8x128xf32>
    %35 = arith.negf %34 : vector<8x128xf32>
    %36 = math.exp %35 : vector<8x128xf32>
    %cst_10 = arith.constant 1.000000e+00 : f32
    %37 = vector.broadcast %cst_10 : f32 to vector<8x128xf32>
    %38 = arith.addf %37, %36 : vector<8x128xf32>
    %39 = arith.divf %37, %38 : vector<8x128xf32>
    %40 = math.tanh %34 : vector<8x128xf32>
    %41 = vector.extract_strided_slice %39 {offsets = [0, 0], sizes = [8, 32], strides = [1, 1]} : vector<8x128xf32> to vector<8x32xf32>
    %42 = vector.extract_strided_slice %39 {offsets = [0, 32], sizes = [8, 32], strides = [1, 1]} : vector<8x128xf32> to vector<8x32xf32>
    %43 = vector.extract_strided_slice %40 {offsets = [0, 64], sizes = [8, 32], strides = [1, 1]} : vector<8x128xf32> to vector<8x32xf32>
    %44 = vector.extract_strided_slice %39 {offsets = [0, 96], sizes = [8, 32], strides = [1, 1]} : vector<8x128xf32> to vector<8x32xf32>
    %45 = arith.mulf %42, %28 : vector<8x32xf32>
    %46 = arith.mulf %41, %43 : vector<8x32xf32>
    %47 = arith.addf %45, %46 : vector<8x32xf32>
    %48 = math.tanh %47 : vector<8x32xf32>
    %49 = arith.mulf %44, %48 : vector<8x32xf32>
    %50 = vector.extract_strided_slice %9 {offsets = [16, 0], sizes = [8, 128], strides = [1, 1]} : vector<64x128xf32> to vector<8x128xf32>
    %51 = arith.truncf %49 : vector<8x32xf32> to vector<8x32xbf16>
    %cst_11 = arith.constant dense<0.000000e+00> : vector<8x128xf32>
    %52 = tpu.matmul %51, %3, %cst_11 {dimension_numbers = #tpu.dot_dimension_numbers<[1], [0], [0], [1], [0, 0, 1, 1], [], []>} : vector<8x32xbf16>, vector<32x128xbf16>, vector<8x128xf32> -> vector<8x128xf32>
    %53 = arith.addf %50, %52 : vector<8x128xf32>
    %54 = arith.negf %53 : vector<8x128xf32>
    %55 = math.exp %54 : vector<8x128xf32>
    %cst_12 = arith.constant 1.000000e+00 : f32
    %56 = vector.broadcast %cst_12 : f32 to vector<8x128xf32>
    %57 = arith.addf %56, %55 : vector<8x128xf32>
    %58 = arith.divf %56, %57 : vector<8x128xf32>
    %59 = math.tanh %53 : vector<8x128xf32>
    %60 = vector.extract_strided_slice %58 {offsets = [0, 0], sizes = [8, 32], strides = [1, 1]} : vector<8x128xf32> to vector<8x32xf32>
    %61 = vector.extract_strided_slice %58 {offsets = [0, 32], sizes = [8, 32], strides = [1, 1]} : vector<8x128xf32> to vector<8x32xf32>
    %62 = vector.extract_strided_slice %59 {offsets = [0, 64], sizes = [8, 32], strides = [1, 1]} : vector<8x128xf32> to vector<8x32xf32>
    %63 = vector.extract_strided_slice %58 {offsets = [0, 96], sizes = [8, 32], strides = [1, 1]} : vector<8x128xf32> to vector<8x32xf32>
    %64 = arith.mulf %61, %47 : vector<8x32xf32>
    %65 = arith.mulf %60, %62 : vector<8x32xf32>
    %66 = arith.addf %64, %65 : vector<8x32xf32>
    %67 = math.tanh %66 : vector<8x32xf32>
    %68 = arith.mulf %63, %67 : vector<8x32xf32>
    %69 = vector.extract_strided_slice %9 {offsets = [24, 0], sizes = [8, 128], strides = [1, 1]} : vector<64x128xf32> to vector<8x128xf32>
    %70 = arith.truncf %68 : vector<8x32xf32> to vector<8x32xbf16>
    %cst_13 = arith.constant dense<0.000000e+00> : vector<8x128xf32>
    %71 = tpu.matmul %70, %3, %cst_13 {dimension_numbers = #tpu.dot_dimension_numbers<[1], [0], [0], [1], [0, 0, 1, 1], [], []>} : vector<8x32xbf16>, vector<32x128xbf16>, vector<8x128xf32> -> vector<8x128xf32>
    %72 = arith.addf %69, %71 : vector<8x128xf32>
    %73 = arith.negf %72 : vector<8x128xf32>
    %74 = math.exp %73 : vector<8x128xf32>
    %cst_14 = arith.constant 1.000000e+00 : f32
    %75 = vector.broadcast %cst_14 : f32 to vector<8x128xf32>
    %76 = arith.addf %75, %74 : vector<8x128xf32>
    %77 = arith.divf %75, %76 : vector<8x128xf32>
    %78 = math.tanh %72 : vector<8x128xf32>
    %79 = vector.extract_strided_slice %77 {offsets = [0, 0], sizes = [8, 32], strides = [1, 1]} : vector<8x128xf32> to vector<8x32xf32>
    %80 = vector.extract_strided_slice %77 {offsets = [0, 32], sizes = [8, 32], strides = [1, 1]} : vector<8x128xf32> to vector<8x32xf32>
    %81 = vector.extract_strided_slice %78 {offsets = [0, 64], sizes = [8, 32], strides = [1, 1]} : vector<8x128xf32> to vector<8x32xf32>
    %82 = vector.extract_strided_slice %77 {offsets = [0, 96], sizes = [8, 32], strides = [1, 1]} : vector<8x128xf32> to vector<8x32xf32>
    %83 = arith.mulf %80, %66 : vector<8x32xf32>
    %84 = arith.mulf %79, %81 : vector<8x32xf32>
    %85 = arith.addf %83, %84 : vector<8x32xf32>
    %86 = math.tanh %85 : vector<8x32xf32>
    %87 = arith.mulf %82, %86 : vector<8x32xf32>
    %88 = vector.extract_strided_slice %9 {offsets = [32, 0], sizes = [8, 128], strides = [1, 1]} : vector<64x128xf32> to vector<8x128xf32>
    %89 = arith.truncf %87 : vector<8x32xf32> to vector<8x32xbf16>
    %cst_15 = arith.constant dense<0.000000e+00> : vector<8x128xf32>
    %90 = tpu.matmul %89, %3, %cst_15 {dimension_numbers = #tpu.dot_dimension_numbers<[1], [0], [0], [1], [0, 0, 1, 1], [], []>} : vector<8x32xbf16>, vector<32x128xbf16>, vector<8x128xf32> -> vector<8x128xf32>
    %91 = arith.addf %88, %90 : vector<8x128xf32>
    %92 = arith.negf %91 : vector<8x128xf32>
    %93 = math.exp %92 : vector<8x128xf32>
    %cst_16 = arith.constant 1.000000e+00 : f32
    %94 = vector.broadcast %cst_16 : f32 to vector<8x128xf32>
    %95 = arith.addf %94, %93 : vector<8x128xf32>
    %96 = arith.divf %94, %95 : vector<8x128xf32>
    %97 = math.tanh %91 : vector<8x128xf32>
    %98 = vector.extract_strided_slice %96 {offsets = [0, 0], sizes = [8, 32], strides = [1, 1]} : vector<8x128xf32> to vector<8x32xf32>
    %99 = vector.extract_strided_slice %96 {offsets = [0, 32], sizes = [8, 32], strides = [1, 1]} : vector<8x128xf32> to vector<8x32xf32>
    %100 = vector.extract_strided_slice %97 {offsets = [0, 64], sizes = [8, 32], strides = [1, 1]} : vector<8x128xf32> to vector<8x32xf32>
    %101 = vector.extract_strided_slice %96 {offsets = [0, 96], sizes = [8, 32], strides = [1, 1]} : vector<8x128xf32> to vector<8x32xf32>
    %102 = arith.mulf %99, %85 : vector<8x32xf32>
    %103 = arith.mulf %98, %100 : vector<8x32xf32>
    %104 = arith.addf %102, %103 : vector<8x32xf32>
    %105 = math.tanh %104 : vector<8x32xf32>
    %106 = arith.mulf %101, %105 : vector<8x32xf32>
    %107 = vector.extract_strided_slice %9 {offsets = [40, 0], sizes = [8, 128], strides = [1, 1]} : vector<64x128xf32> to vector<8x128xf32>
    %108 = arith.truncf %106 : vector<8x32xf32> to vector<8x32xbf16>
    %cst_17 = arith.constant dense<0.000000e+00> : vector<8x128xf32>
    %109 = tpu.matmul %108, %3, %cst_17 {dimension_numbers = #tpu.dot_dimension_numbers<[1], [0], [0], [1], [0, 0, 1, 1], [], []>} : vector<8x32xbf16>, vector<32x128xbf16>, vector<8x128xf32> -> vector<8x128xf32>
    %110 = arith.addf %107, %109 : vector<8x128xf32>
    %111 = arith.negf %110 : vector<8x128xf32>
    %112 = math.exp %111 : vector<8x128xf32>
    %cst_18 = arith.constant 1.000000e+00 : f32
    %113 = vector.broadcast %cst_18 : f32 to vector<8x128xf32>
    %114 = arith.addf %113, %112 : vector<8x128xf32>
    %115 = arith.divf %113, %114 : vector<8x128xf32>
    %116 = math.tanh %110 : vector<8x128xf32>
    %117 = vector.extract_strided_slice %115 {offsets = [0, 0], sizes = [8, 32], strides = [1, 1]} : vector<8x128xf32> to vector<8x32xf32>
    %118 = vector.extract_strided_slice %115 {offsets = [0, 32], sizes = [8, 32], strides = [1, 1]} : vector<8x128xf32> to vector<8x32xf32>
    %119 = vector.extract_strided_slice %116 {offsets = [0, 64], sizes = [8, 32], strides = [1, 1]} : vector<8x128xf32> to vector<8x32xf32>
    %120 = vector.extract_strided_slice %115 {offsets = [0, 96], sizes = [8, 32], strides = [1, 1]} : vector<8x128xf32> to vector<8x32xf32>
    %121 = arith.mulf %118, %104 : vector<8x32xf32>
    %122 = arith.mulf %117, %119 : vector<8x32xf32>
    %123 = arith.addf %121, %122 : vector<8x32xf32>
    %124 = math.tanh %123 : vector<8x32xf32>
    %125 = arith.mulf %120, %124 : vector<8x32xf32>
    %126 = vector.extract_strided_slice %9 {offsets = [48, 0], sizes = [8, 128], strides = [1, 1]} : vector<64x128xf32> to vector<8x128xf32>
    %127 = arith.truncf %125 : vector<8x32xf32> to vector<8x32xbf16>
    %cst_19 = arith.constant dense<0.000000e+00> : vector<8x128xf32>
    %128 = tpu.matmul %127, %3, %cst_19 {dimension_numbers = #tpu.dot_dimension_numbers<[1], [0], [0], [1], [0, 0, 1, 1], [], []>} : vector<8x32xbf16>, vector<32x128xbf16>, vector<8x128xf32> -> vector<8x128xf32>
    %129 = arith.addf %126, %128 : vector<8x128xf32>
    %130 = arith.negf %129 : vector<8x128xf32>
    %131 = math.exp %130 : vector<8x128xf32>
    %cst_20 = arith.constant 1.000000e+00 : f32
    %132 = vector.broadcast %cst_20 : f32 to vector<8x128xf32>
    %133 = arith.addf %132, %131 : vector<8x128xf32>
    %134 = arith.divf %132, %133 : vector<8x128xf32>
    %135 = math.tanh %129 : vector<8x128xf32>
    %136 = vector.extract_strided_slice %134 {offsets = [0, 0], sizes = [8, 32], strides = [1, 1]} : vector<8x128xf32> to vector<8x32xf32>
    %137 = vector.extract_strided_slice %134 {offsets = [0, 32], sizes = [8, 32], strides = [1, 1]} : vector<8x128xf32> to vector<8x32xf32>
    %138 = vector.extract_strided_slice %135 {offsets = [0, 64], sizes = [8, 32], strides = [1, 1]} : vector<8x128xf32> to vector<8x32xf32>
    %139 = vector.extract_strided_slice %134 {offsets = [0, 96], sizes = [8, 32], strides = [1, 1]} : vector<8x128xf32> to vector<8x32xf32>
    %140 = arith.mulf %137, %123 : vector<8x32xf32>
    %141 = arith.mulf %136, %138 : vector<8x32xf32>
    %142 = arith.addf %140, %141 : vector<8x32xf32>
    %143 = math.tanh %142 : vector<8x32xf32>
    %144 = arith.mulf %139, %143 : vector<8x32xf32>
    %145 = vector.extract_strided_slice %9 {offsets = [56, 0], sizes = [8, 128], strides = [1, 1]} : vector<64x128xf32> to vector<8x128xf32>
    %146 = arith.truncf %144 : vector<8x32xf32> to vector<8x32xbf16>
    %cst_21 = arith.constant dense<0.000000e+00> : vector<8x128xf32>
    %147 = tpu.matmul %146, %3, %cst_21 {dimension_numbers = #tpu.dot_dimension_numbers<[1], [0], [0], [1], [0, 0, 1, 1], [], []>} : vector<8x32xbf16>, vector<32x128xbf16>, vector<8x128xf32> -> vector<8x128xf32>
    %148 = arith.addf %145, %147 : vector<8x128xf32>
    %149 = arith.negf %148 : vector<8x128xf32>
    %150 = math.exp %149 : vector<8x128xf32>
    %cst_22 = arith.constant 1.000000e+00 : f32
    %151 = vector.broadcast %cst_22 : f32 to vector<8x128xf32>
    %152 = arith.addf %151, %150 : vector<8x128xf32>
    %153 = arith.divf %151, %152 : vector<8x128xf32>
    %154 = math.tanh %148 : vector<8x128xf32>
    %155 = vector.extract_strided_slice %153 {offsets = [0, 0], sizes = [8, 32], strides = [1, 1]} : vector<8x128xf32> to vector<8x32xf32>
    %156 = vector.extract_strided_slice %153 {offsets = [0, 32], sizes = [8, 32], strides = [1, 1]} : vector<8x128xf32> to vector<8x32xf32>
    %157 = vector.extract_strided_slice %154 {offsets = [0, 64], sizes = [8, 32], strides = [1, 1]} : vector<8x128xf32> to vector<8x32xf32>
    %158 = vector.extract_strided_slice %153 {offsets = [0, 96], sizes = [8, 32], strides = [1, 1]} : vector<8x128xf32> to vector<8x32xf32>
    %159 = arith.mulf %156, %142 : vector<8x32xf32>
    %160 = arith.mulf %155, %157 : vector<8x32xf32>
    %161 = arith.addf %159, %160 : vector<8x32xf32>
    %162 = math.tanh %161 : vector<8x32xf32>
    %163 = arith.mulf %158, %162 : vector<8x32xf32>
    %c0_23 = arith.constant 0 : index
    %c0_24 = arith.constant 0 : index
    %164 = vector.load %arg2[%c0_23, %c0_24] : memref<176x256xf32, #tpu.memory_space<vmem>>, vector<32x128xf32>
    %c32 = arith.constant 32 : index
    %c0_25 = arith.constant 0 : index
    %165 = vector.load %arg2[%c32, %c0_25] : memref<176x256xf32, #tpu.memory_space<vmem>>, vector<1x128xf32>
    %c40 = arith.constant 40 : index
    %c0_26 = arith.constant 0 : index
    %166 = vector.load %arg2[%c40, %c0_26] : memref<176x256xf32, #tpu.memory_space<vmem>>, vector<128x256xf32>
    %c168 = arith.constant 168 : index
    %c0_27 = arith.constant 0 : index
    %167 = vector.load %arg2[%c168, %c0_27] : memref<176x256xf32, #tpu.memory_space<vmem>>, vector<1x256xf32>
    %cst_28 = arith.constant dense<0.000000e+00> : vector<8x128xf32>
    %168 = tpu.matmul %163, %164, %cst_28 {dimension_numbers = #tpu.dot_dimension_numbers<[1], [0], [0], [1], [0, 0, 1, 1], [], []>} : vector<8x32xf32>, vector<32x128xf32>, vector<8x128xf32> -> vector<8x128xf32>
    %169 = vector.broadcast %165 : vector<1x128xf32> to vector<8x128xf32>
    %170 = arith.addf %168, %169 : vector<8x128xf32>
    %cst_29 = arith.constant 0.000000e+00 : f32
    %171 = vector.broadcast %cst_29 : f32 to vector<8x128xf32>
    %172 = arith.maximumf %170, %171 : vector<8x128xf32>
    %cst_30 = arith.constant dense<0.000000e+00> : vector<8x256xf32>
    %173 = tpu.matmul %172, %166, %cst_30 {dimension_numbers = #tpu.dot_dimension_numbers<[1], [0], [0], [1], [0, 0, 1, 1], [], []>} : vector<8x128xf32>, vector<128x256xf32>, vector<8x256xf32> -> vector<8x256xf32>
    %174 = vector.broadcast %167 : vector<1x256xf32> to vector<8x256xf32>
    %175 = arith.addf %173, %174 : vector<8x256xf32>
    %c0_31 = arith.constant 0 : index
    %c0_32 = arith.constant 0 : index
    %176 = vector.load %arg3[%c0_31, %c0_32] : memref<8x256xf32, #tpu.memory_space<vmem>>, vector<8x256xf32>
    tpu.vector_store %arg3[%c0_31, %c0_32], %175 {strides = array<i32>} : memref<8x256xf32, #tpu.memory_space<vmem>>, vector<8x256xf32>,
    return
  }
}

</mosaic_0001>

<llo_original>
// kernel: tpu_custom_call.1
$region0: #{tpu_custom_call.1}
  #allocation0 [shape = 'u32[]', space=smem, size = 0x4, offset = 0x4, fixed_abs, tag = 'smem constant byte address 0x4 - core index']
  #allocation1 [shape = 'u32[144,128]{1,0:T(1,128)}', space=vmem, size = 0x12000, scoped, tag = 'internal scratch']
  %s0 = inlined_call_operand.vmem [shape: f32[64,16], index: 0, kind: input, shape index: {}]
  %s1 = inlined_call_operand.vmem [shape: f32[56,128], index: 1, kind: input, shape index: {}]
  %s2 = inlined_call_operand.hbm [shape: f32[176,256], index: 2, kind: input, shape index: {}]
  %s3 = inlined_call_operand.hbm [shape: f32[8,256], index: 3, kind: output, shape index: {}]
  %s4 = sld [smem:[#allocation0]]
  $region26: #{tpu_custom_call.1} parent=0
    _
  %s6 = ssub.s32 1, %s4
  %s7 = scalar_select 0, %s6, %s4
  $region1: #{tpu_custom_call.1} parent=0
    #allocation2 [shape = 'u8[180224]{0}', space=vmem, size = 0x2c000, scoped, tag = 'input window, operand 2, single buffered']
    #allocation3 [shape = 's32[1]{0}', space=sflag, size = 0x4, scoped, tag = 'scoped memory for tpu_custom_call.1']
    #allocation4 [shape = 's32[1]{0}', space=sflag, size = 0x4, scoped, tag = 'scoped memory for tpu_custom_call.1']
    #allocation5 [shape = 'u8[8192]{0}', space=vmem, size = 0x2000, scoped, tag = 'output window, operand 0, single buffered']
    %8 = vsyncpa [#allocation3], 0
    %9 = vsyncpa [#allocation4], 0
    // Predicated region
    $region2: #{tpu_custom_call.1} parent=1 // pred_check
      _
    $region3: #{tpu_custom_call.1} parent=1 // pred_check_branch
      %11 = sbr.rel (0) target = $region5
    $region4: #{tpu_custom_call.1} parent=1 // pred_region
      _
    $region5: #{tpu_custom_call.1} parent=1 // pred_fallthru
      _
    // Predicated region
    $region6: #{tpu_custom_call.1} parent=1 // pred_check
      _
    $region7: #{tpu_custom_call.1} parent=1 // pred_check_branch
      %13 = sbr.rel (0) target = $region9
    $region8: #{tpu_custom_call.1} parent=1 // pred_region
      _
    $region9: #{tpu_custom_call.1} parent=1 // pred_fallthru
      _
    // Predicated region
    $region10: #{tpu_custom_call.1} parent=1 // pred_check
      _
    $region11: #{tpu_custom_call.1} parent=1 // pred_check_branch
      %15 = sbr.rel (0) target = $region13
    $region12: #{tpu_custom_call.1} parent=1 // pred_region
      %s17 = ssub.s32 5632, 5632
      %18 = vsyncadd [#allocation3], %s17
      %s19 = sshll.u32 [#allocation2], 4
      %s20 = int_to_ptr.vmem [resolvable:$true] %s19
      %25 = dma.hbm_to_vmem [thread:$0]  %s2, 5632, %s20, [#allocation3], 256, 256, 16
    $region13: #{tpu_custom_call.1} parent=1 // pred_fallthru
      _
    // Predicated region
    $region14: #{tpu_custom_call.1} parent=1 // pred_check
      _
    $region15: #{tpu_custom_call.1} parent=1 // pred_check_branch
      %27 = sbr.rel (0) target = $region17
    $region16: #{tpu_custom_call.1} parent=1 // pred_region
      %28 = dma.done [#allocation3], 5632
    $region17: #{tpu_custom_call.1} parent=1 // pred_fallthru
      _
    %v30 = vld [vmem:[%s1] sm:$0xff]
    %v31 = vld [vmem:[%s1 + $0x8] sm:$0xff]
    %v32 = vpack.c.bf16 %v31, %v30
    %v33 = vld [vmem:[%s1 + $0x10] sm:$0xff]
    %v34 = vld [vmem:[%s1 + $0x18] sm:$0xff]
    %v35 = vld [vmem:[%s1 + $0x20] sm:$0xff]
    %v36 = vld [vmem:[%s1 + $0x28] sm:$0xff]
    %v37 = vpack.c.bf16 %v34, %v33
    %v38 = vpack.c.bf16 %v36, %v35
    %v39 = vld [vmem:[%s1 + $0x30] sm:$0x1]
    %v40 = vld [vmem:[%s0] sm:$0xff]
    %v41 = vld [vmem:[%s0 + $0x8] sm:$0xff]
    %v42 = vld [vmem:[%s0 + $0x10] sm:$0xff]
    %v43 = vld [vmem:[%s0 + $0x18] sm:$0xff]
    %v44 = vld [vmem:[%s0 + $0x20] sm:$0xff]
    %v45 = vld [vmem:[%s0 + $0x28] sm:$0xff]
    %v46 = vld [vmem:[%s0 + $0x30] sm:$0xff]
    %v47 = vld [vmem:[%s0 + $0x38] sm:$0xff]
    %v48 = vpack.c.bf16 %v41, %v40
    %v49 = vpack.c.bf16 %v43, %v42
    %v50 = vpack.c.bf16 %v45, %v44
    %v51 = vpack.c.bf16 %v47, %v46
    %v52 = vlaneseq
    %v53 = vshrl.u32 %v52, 7
    %v54 = vsub.s32 0, %v53
    %v55 = vrot.slane %v39, %v54
    %vm56 = vcmask 130048
    %v58 = vsel %vm56, %v48, 0
    %v61 = vsel %vm56, %v49, 0
    %v64 = vsel %vm56, %v50, 0
    %v67 = vsel %vm56, %v51, 0
    %69 = vmatprep.subr.bf16.mxu0 0
    %70 = vmatpush1.bf16.msra.mxu0 0
    %71 = vmatprep.subr.bf16.mxu0 0
    %72 = vmatpush1.bf16.msra.mxu0 0
    %73 = vmatprep.subr.bf16.mxu0 0
    %74 = vmatpush1.bf16.msra.mxu0 0
    %75 = vmatprep.subr.bf16.mxu0 0
    %76 = vmatpush1.bf16.msra.mxu0 0
    %77 = vmatprep.subr.bf16.mxu0 0
    %78 = vmatpush1.bf16.msra.mxu0 0
    %79 = vmatprep.subr.bf16.mxu0 0
    %80 = vmatpush1.bf16.msra.mxu0 0
    %81 = vmatprep.subr.bf16.mxu0 0
    %82 = vmatpush1.bf16.msra.mxu0 0
    %83 = vmatprep.subr.bf16.mxu0 0
    %84 = vmatpush1.bf16.msra.mxu0 %v32
    %85 = vmatprep.subr.bf16.mxu0 0
    %86 = vmatpush2.bf16.msra.mxu0 0
    %87 = vmatprep.subr.bf16.mxu0 0
    %88 = vmatpush2.bf16.msra.mxu0 0
    %89 = vmatprep.subr.bf16.mxu0 0
    %90 = vmatpush2.bf16.msra.mxu0 0
    %91 = vmatprep.subr.bf16.mxu0 0
    %92 = vmatpush2.bf16.msra.mxu0 0
    %93 = vmatprep.subr.bf16.mxu0 0
    %94 = vmatpush2.bf16.msra.mxu0 0
    %95 = vmatprep.subr.bf16.mxu0 0
    %96 = vmatpush2.bf16.msra.mxu0 0
    %97 = vmatprep.subr.bf16.mxu0 0
    %98 = vmatpush2.bf16.msra.mxu0 0
    %99 = vmatprep.subr.bf16.mxu0 0
    %100 = vmatpush2.bf16.msra.mxu0 0
    %101 = vmatprep.mubr.bf16.mxu0 0
    %102 = vmatmul.mubr.bf16.gmra.mxu0 %v58
    %v103 = vpop.f32.mrf.mxu0
    %v104 = vadd.f32 %v55, %v103
    %v105 = vpop.f32.mrf.mxu0
    %v106 = vpop.f32.mrf.mxu0
    %v107 = vadd.f32 %v55, %v106
    %v108 = vpop.f32.mrf.mxu0
    %109 = vmatprep.mubr.bf16.mxu0 0
    %110 = vmatmul.mubr.bf16.gmra.mxu0 %v61
    %v111 = vpop.f32.mrf.mxu0
    %v112 = vadd.f32 %v55, %v111
    %v113 = vpop.f32.mrf.mxu0
    %v114 = vpop.f32.mrf.mxu0
    %v115 = vadd.f32 %v55, %v114
    %v116 = vpop.f32.mrf.mxu0
    %117 = vmatprep.mubr.bf16.mxu0 0
    %118 = vmatmul.mubr.bf16.gmra.mxu0 %v64
    %v119 = vpop.f32.mrf.mxu0
    %v120 = vadd.f32 %v55, %v119
    %v121 = vpop.f32.mrf.mxu0
    %v122 = vpop.f32.mrf.mxu0
    %v123 = vadd.f32 %v55, %v122
    %v124 = vpop.f32.mrf.mxu0
    %125 = vmatprep.mubr.bf16.mxu0 0
    %126 = vmatmul.mubr.bf16.gmra.mxu0 %v67
    %v127 = vpop.f32.mrf.mxu0
    %v128 = vadd.f32 %v55, %v127
    %v129 = vpop.f32.mrf.mxu0
    %v130 = vpop.f32.mrf.mxu0
    %v131 = vadd.f32 %v55, %v130
    %v132 = vpop.f32.mrf.mxu0
    %133 = vdwg.mxu0
    %vm134 = vcmask 261120
    %v136 = vsel %vm134, 0, 0
    %138 = vmatprep.subr.bf16.mxu0 0
    %139 = vmatpush1.bf16.msra.mxu0 0
    %140 = vmatprep.subr.bf16.mxu0 0
    %141 = vmatpush1.bf16.msra.mxu0 0
    %142 = vmatprep.subr.bf16.mxu0 0
    %143 = vmatpush1.bf16.msra.mxu0 0
    %144 = vmatprep.subr.bf16.mxu0 0
    %145 = vmatpush1.bf16.msra.mxu0 0
    %146 = vmatprep.subr.bf16.mxu0 0
    %147 = vmatpush1.bf16.msra.mxu0 0
    %148 = vmatprep.subr.bf16.mxu0 0
    %149 = vmatpush1.bf16.msra.mxu0 0
    %150 = vmatprep.subr.bf16.mxu0 0
    %151 = vmatpush1.bf16.msra.mxu0 %v38
    %152 = vmatprep.subr.bf16.mxu0 0
    %153 = vmatpush1.bf16.msra.mxu0 %v37
    %154 = vmatprep.subr.bf16.mxu0 0
    %155 = vmatpush2.bf16.msra.mxu0 0
    %156 = vmatprep.subr.bf16.mxu0 0
    %157 = vmatpush2.bf16.msra.mxu0 0
    %158 = vmatprep.subr.bf16.mxu0 0
    %159 = vmatpush2.bf16.msra.mxu0 0
    %160 = vmatprep.subr.bf16.mxu0 0
    %161 = vmatpush2.bf16.msra.mxu0 0
    %162 = vmatprep.subr.bf16.mxu0 0
    %163 = vmatpush2.bf16.msra.mxu0 0
    %164 = vmatprep.subr.bf16.mxu0 0
    %165 = vmatpush2.bf16.msra.mxu0 0
    %166 = vmatprep.subr.bf16.mxu0 0
    %167 = vmatpush2.bf16.msra.mxu0 0
    %168 = vmatprep.subr.bf16.mxu0 0
    %169 = vmatpush2.bf16.msra.mxu0 0
    %170 = vmatprep.mubr.bf16.mxu0 0
    %171 = vmatmul.mubr.bf16.gmra.mxu0 %v136
    %v172 = vpop.f32.mrf.mxu0
    %v173 = vadd.f32 0.0, %v172
    %v174 = vpop.f32.mrf.mxu0
    %v175 = vpop.f32.mrf.mxu0
    %v176 = vpop.f32.mrf.mxu0
    %177 = vdwg.mxu0
    %v178 = vadd.f32 %v104, %v173
    %v179 = vxor.u32 %v178, 2147483648
    %v180 = vmul.f32 %v179, 1.442695
    %v181 = vpow.pop %v180
    %v182 = vadd.f32 %v181, 1.0
    %v183 = vrcp.pop %v182
    %v184 = vmul.f32 1.0, %v183
    %v185 = vtanh.pop %v178
    %v186 = vmul.f32 %v184, 0.0
    %188 = vrot.lane.b32.xlu0 %v185, 64
    %v189 = vpop.permute.xlu0 %188
    %v191 = vmul.f32 %v184, %v189
    %193 = vrot.lane.b32.xlu0 %v191, 32
    %v194 = vpop.permute.xlu0 %193
    %v196 = vadd.f32 %v186, %v194
    %v197 = vtanh.pop %v196
    %199 = vrot.lane.b32.xlu0 %v197, 64
    %v200 = vpop.permute.xlu0 %199
    %v202 = vmul.f32 %v184, %v200
    %v203 = vpack.c.bf16 %v202, %v202
    %205 = vrot.lane.b32.xlu0 %v203, 32
    %v206 = vpop.permute.xlu0 %205
    %v208 = vsel %vm134, %v206, 0
    %210 = vmatprep.subr.bf16.mxu0 0
    %211 = vmatpush1.bf16.msra.mxu0 0
    %212 = vmatprep.subr.bf16.mxu0 0
    %213 = vmatpush1.bf16.msra.mxu0 0
    %214 = vmatprep.subr.bf16.mxu0 0
    %215 = vmatpush1.bf16.msra.mxu0 0
    %216 = vmatprep.subr.bf16.mxu0 0
    %217 = vmatpush1.bf16.msra.mxu0 0
    %218 = vmatprep.subr.bf16.mxu0 0
    %219 = vmatpush1.bf16.msra.mxu0 0
    %220 = vmatprep.subr.bf16.mxu0 0
    %221 = vmatpush1.bf16.msra.mxu0 0
    %222 = vmatprep.subr.bf16.mxu0 0
    %223 = vmatpush1.bf16.msra.mxu0 %v38
    %224 = vmatprep.subr.bf16.mxu0 0
    %225 = vmatpush1.bf16.msra.mxu0 %v37
    %226 = vmatprep.subr.bf16.mxu0 0
    %227 = vmatpush2.bf16.msra.mxu0 0
    %228 = vmatprep.subr.bf16.mxu0 0
    %229 = vmatpush2.bf16.msra.mxu0 0
    %230 = vmatprep.subr.bf16.mxu0 0
    %231 = vmatpush2.bf16.msra.mxu0 0
    %232 = vmatprep.subr.bf16.mxu0 0
    %233 = vmatpush2.bf16.msra.mxu0 0
    %234 = vmatprep.subr.bf16.mxu0 0
    %235 = vmatpush2.bf16.msra.mxu0 0
    %236 = vmatprep.subr.bf16.mxu0 0
    %237 = vmatpush2.bf16.msra.mxu0 0
    %238 = vmatprep.subr.bf16.mxu0 0
    %239 = vmatpush2.bf16.msra.mxu0 0
    %240 = vmatprep.subr.bf16.mxu0 0
    %241 = vmatpush2.bf16.msra.mxu0 0
    %242 = vmatprep.mubr.bf16.mxu0 0
    %243 = vmatmul.mubr.bf16.gmra.mxu0 %v208
    %v244 = vpop.f32.mrf.mxu0
    %v245 = vadd.f32 0.0, %v244
    %v246 = vpop.f32.mrf.mxu0
    %v247 = vpop.f32.mrf.mxu0
    %v248 = vpop.f32.mrf.mxu0
    %249 = vdwg.mxu0
    %v250 = vadd.f32 %v107, %v245
    %v251 = vxor.u32 %v250, 2147483648
    %v252 = vmul.f32 %v251, 1.442695
    %v253 = vpow.pop %v252
    %v254 = vadd.f32 %v253, 1.0
    %v255 = vrcp.pop %v254
    %v256 = vmul.f32 1.0, %v255
    %v257 = vtanh.pop %v250
    %v258 = vmul.f32 %v256, %v196
    %260 = vrot.lane.b32.xlu0 %v257, 64
    %v261 = vpop.permute.xlu0 %260
    %v263 = vmul.f32 %v256, %v261
    %265 = vrot.lane.b32.xlu0 %v263, 32
    %v266 = vpop.permute.xlu0 %265
    %v268 = vadd.f32 %v258, %v266
    %v269 = vtanh.pop %v268
    %271 = vrot.lane.b32.xlu0 %v269, 64
    %v272 = vpop.permute.xlu0 %271
    %v274 = vmul.f32 %v256, %v272
    %v275 = vpack.c.bf16 %v274, %v274
    %277 = vrot.lane.b32.xlu0 %v275, 32
    %v278 = vpop.permute.xlu0 %277
    %v280 = vsel %vm134, %v278, 0
    %282 = vmatprep.subr.bf16.mxu0 0
    %283 = vmatpush1.bf16.msra.mxu0 0
    %284 = vmatprep.subr.bf16.mxu0 0
    %285 = vmatpush1.bf16.msra.mxu0 0
    %286 = vmatprep.subr.bf16.mxu0 0
    %287 = vmatpush1.bf16.msra.mxu0 0
    %288 = vmatprep.subr.bf16.mxu0 0
    %289 = vmatpush1.bf16.msra.mxu0 0
    %290 = vmatprep.subr.bf16.mxu0 0
    %291 = vmatpush1.bf16.msra.mxu0 0
    %292 = vmatprep.subr.bf16.mxu0 0
    %293 = vmatpush1.bf16.msra.mxu0 0
    %294 = vmatprep.subr.bf16.mxu0 0
    %295 = vmatpush1.bf16.msra.mxu0 %v38
    %296 = vmatprep.subr.bf16.mxu0 0
    %297 = vmatpush1.bf16.msra.mxu0 %v37
    %298 = vmatprep.subr.bf16.mxu0 0
    %299 = vmatpush2.bf16.msra.mxu0 0
    %300 = vmatprep.subr.bf16.mxu0 0
    %301 = vmatpush2.bf16.msra.mxu0 0
    %302 = vmatprep.subr.bf16.mxu0 0
    %303 = vmatpush2.bf16.msra.mxu0 0
    %304 = vmatprep.subr.bf16.mxu0 0
    %305 = vmatpush2.bf16.msra.mxu0 0
    %306 = vmatprep.subr.bf16.mxu0 0
    %307 = vmatpush2.bf16.msra.mxu0 0
    %308 = vmatprep.subr.bf16.mxu0 0
    %309 = vmatpush2.bf16.msra.mxu0 0
    %310 = vmatprep.subr.bf16.mxu0 0
    %311 = vmatpush2.bf16.msra.mxu0 0
    %312 = vmatprep.subr.bf16.mxu0 0
    %313 = vmatpush2.bf16.msra.mxu0 0
    %314 = vmatprep.mubr.bf16.mxu0 0
    %315 = vmatmul.mubr.bf16.gmra.mxu0 %v280
    %v316 = vpop.f32.mrf.mxu0
    %v317 = vadd.f32 0.0, %v316
    %v318 = vpop.f32.mrf.mxu0
    %v319 = vpop.f32.mrf.mxu0
    %v320 = vpop.f32.mrf.mxu0
    %321 = vdwg.mxu0
    %v322 = vadd.f32 %v112, %v317
    %v323 = vxor.u32 %v322, 2147483648
    %v324 = vmul.f32 %v323, 1.442695
    %v325 = vpow.pop %v324
    %v326 = vadd.f32 %v325, 1.0
    %v327 = vrcp.pop %v326
    %v328 = vmul.f32 1.0, %v327
    %v329 = vtanh.pop %v322
    %v330 = vmul.f32 %v328, %v268
    %332 = vrot.lane.b32.xlu0 %v329, 64
    %v333 = vpop.permute.xlu0 %332
    %v335 = vmul.f32 %v328, %v333
    %337 = vrot.lane.b32.xlu0 %v335, 32
    %v338 = vpop.permute.xlu0 %337
    %v340 = vadd.f32 %v330, %v338
    %v341 = vtanh.pop %v340
    %343 = vrot.lane.b32.xlu0 %v341, 64
    %v344 = vpop.permute.xlu0 %343
    %v346 = vmul.f32 %v328, %v344
    %v347 = vpack.c.bf16 %v346, %v346
    %349 = vrot.lane.b32.xlu0 %v347, 32
    %v350 = vpop.permute.xlu0 %349
    %v352 = vsel %vm134, %v350, 0
    %354 = vmatprep.subr.bf16.mxu0 0
    %355 = vmatpush1.bf16.msra.mxu0 0
    %356 = vmatprep.subr.bf16.mxu0 0
    %357 = vmatpush1.bf16.msra.mxu0 0
    %358 = vmatprep.subr.bf16.mxu0 0
    %359 = vmatpush1.bf16.msra.mxu0 0
    %360 = vmatprep.subr.bf16.mxu0 0
    %361 = vmatpush1.bf16.msra.mxu0 0
    %362 = vmatprep.subr.bf16.mxu0 0
    %363 = vmatpush1.bf16.msra.mxu0 0
    %364 = vmatprep.subr.bf16.mxu0 0
    %365 = vmatpush1.bf16.msra.mxu0 0
    %366 = vmatprep.subr.bf16.mxu0 0
    %367 = vmatpush1.bf16.msra.mxu0 %v38
    %368 = vmatprep.subr.bf16.mxu0 0
    %369 = vmatpush1.bf16.msra.mxu0 %v37
    %370 = vmatprep.subr.bf16.mxu0 0
    %371 = vmatpush2.bf16.msra.mxu0 0
    %372 = vmatprep.subr.bf16.mxu0 0
    %373 = vmatpush2.bf16.msra.mxu0 0
    %374 = vmatprep.subr.bf16.mxu0 0
    %375 = vmatpush2.bf16.msra.mxu0 0
    %376 = vmatprep.subr.bf16.mxu0 0
    %377 = vmatpush2.bf16.msra.mxu0 0
    %378 = vmatprep.subr.bf16.mxu0 0
    %379 = vmatpush2.bf16.msra.mxu0 0
    %380 = vmatprep.subr.bf16.mxu0 0
    %381 = vmatpush2.bf16.msra.mxu0 0
    %382 = vmatprep.subr.bf16.mxu0 0
    %383 = vmatpush2.bf16.msra.mxu0 0
    %384 = vmatprep.subr.bf16.mxu0 0
    %385 = vmatpush2.bf16.msra.mxu0 0
    %386 = vmatprep.mubr.bf16.mxu0 0
    %387 = vmatmul.mubr.bf16.gmra.mxu0 %v352
    %v388 = vpop.f32.mrf.mxu0
    %v389 = vadd.f32 0.0, %v388
    %v390 = vpop.f32.mrf.mxu0
    %v391 = vpop.f32.mrf.mxu0
    %v392 = vpop.f32.mrf.mxu0
    %393 = vdwg.mxu0
    %v394 = vadd.f32 %v115, %v389
    %v395 = vxor.u32 %v394, 2147483648
    %v396 = vmul.f32 %v395, 1.442695
    %v397 = vpow.pop %v396
    %v398 = vadd.f32 %v397, 1.0
    %v399 = vrcp.pop %v398
    %v400 = vmul.f32 1.0, %v399
    %v401 = vtanh.pop %v394
    %v402 = vmul.f32 %v400, %v340
    %404 = vrot.lane.b32.xlu0 %v401, 64
    %v405 = vpop.permute.xlu0 %404
    %v407 = vmul.f32 %v400, %v405
    %409 = vrot.lane.b32.xlu0 %v407, 32
    %v410 = vpop.permute.xlu0 %409
    %v412 = vadd.f32 %v402, %v410
    %v413 = vtanh.pop %v412
    %415 = vrot.lane.b32.xlu0 %v413, 64
    %v416 = vpop.permute.xlu0 %415
    %v418 = vmul.f32 %v400, %v416
    %v419 = vpack.c.bf16 %v418, %v418
    %421 = vrot.lane.b32.xlu0 %v419, 32
    %v422 = vpop.permute.xlu0 %421
    %v424 = vsel %vm134, %v422, 0
    %426 = vmatprep.subr.bf16.mxu0 0
    %427 = vmatpush1.bf16.msra.mxu0 0
    %428 = vmatprep.subr.bf16.mxu0 0
    %429 = vmatpush1.bf16.msra.mxu0 0
    %430 = vmatprep.subr.bf16.mxu0 0
    %431 = vmatpush1.bf16.msra.mxu0 0
    %432 = vmatprep.subr.bf16.mxu0 0
    %433 = vmatpush1.bf16.msra.mxu0 0
    %434 = vmatprep.subr.bf16.mxu0 0
    %435 = vmatpush1.bf16.msra.mxu0 0
    %436 = vmatprep.subr.bf16.mxu0 0
    %437 = vmatpush1.bf16.msra.mxu0 0
    %438 = vmatprep.subr.bf16.mxu0 0
    %439 = vmatpush1.bf16.msra.mxu0 %v38
    %440 = vmatprep.subr.bf16.mxu0 0
    %441 = vmatpush1.bf16.msra.mxu0 %v37
    %442 = vmatprep.subr.bf16.mxu0 0
    %443 = vmatpush2.bf16.msra.mxu0 0
    %444 = vmatprep.subr.bf16.mxu0 0
    %445 = vmatpush2.bf16.msra.mxu0 0
    %446 = vmatprep.subr.bf16.mxu0 0
    %447 = vmatpush2.bf16.msra.mxu0 0
    %448 = vmatprep.subr.bf16.mxu0 0
    %449 = vmatpush2.bf16.msra.mxu0 0
    %450 = vmatprep.subr.bf16.mxu0 0
    %451 = vmatpush2.bf16.msra.mxu0 0
    %452 = vmatprep.subr.bf16.mxu0 0
    %453 = vmatpush2.bf16.msra.mxu0 0
    %454 = vmatprep.subr.bf16.mxu0 0
    %455 = vmatpush2.bf16.msra.mxu0 0
    %456 = vmatprep.subr.bf16.mxu0 0
    %457 = vmatpush2.bf16.msra.mxu0 0
    %458 = vmatprep.mubr.bf16.mxu0 0
    %459 = vmatmul.mubr.bf16.gmra.mxu0 %v424
    %v460 = vpop.f32.mrf.mxu0
    %v461 = vadd.f32 0.0, %v460
    %v462 = vpop.f32.mrf.mxu0
    %v463 = vpop.f32.mrf.mxu0
    %v464 = vpop.f32.mrf.mxu0
    %465 = vdwg.mxu0
    %v466 = vadd.f32 %v120, %v461
    %v467 = vxor.u32 %v466, 2147483648
    %v468 = vmul.f32 %v467, 1.442695
    %v469 = vpow.pop %v468
    %v470 = vadd.f32 %v469, 1.0
    %v471 = vrcp.pop %v470
    %v472 = vmul.f32 1.0, %v471
    %v473 = vtanh.pop %v466
    %v474 = vmul.f32 %v472, %v412
    %476 = vrot.lane.b32.xlu0 %v473, 64
    %v477 = vpop.permute.xlu0 %476
    %v479 = vmul.f32 %v472, %v477
    %481 = vrot.lane.b32.xlu0 %v479, 32
    %v482 = vpop.permute.xlu0 %481
    %v484 = vadd.f32 %v474, %v482
    %v485 = vtanh.pop %v484
    %487 = vrot.lane.b32.xlu0 %v485, 64
    %v488 = vpop.permute.xlu0 %487
    %v490 = vmul.f32 %v472, %v488
    %v491 = vpack.c.bf16 %v490, %v490
    %493 = vrot.lane.b32.xlu0 %v491, 32
    %v494 = vpop.permute.xlu0 %493
    %v496 = vsel %vm134, %v494, 0
    %498 = vmatprep.subr.bf16.mxu0 0
    %499 = vmatpush1.bf16.msra.mxu0 0
    %500 = vmatprep.subr.bf16.mxu0 0
    %501 = vmatpush1.bf16.msra.mxu0 0
    %502 = vmatprep.subr.bf16.mxu0 0
    %503 = vmatpush1.bf16.msra.mxu0 0
    %504 = vmatprep.subr.bf16.mxu0 0
    %505 = vmatpush1.bf16.msra.mxu0 0
    %506 = vmatprep.subr.bf16.mxu0 0
    %507 = vmatpush1.bf16.msra.mxu0 0
    %508 = vmatprep.subr.bf16.mxu0 0
    %509 = vmatpush1.bf16.msra.mxu0 0
    %510 = vmatprep.subr.bf16.mxu0 0
    %511 = vmatpush1.bf16.msra.mxu0 %v38
    %512 = vmatprep.subr.bf16.mxu0 0
    %513 = vmatpush1.bf16.msra.mxu0 %v37
    %514 = vmatprep.subr.bf16.mxu0 0
    %515 = vmatpush2.bf16.msra.mxu0 0
    %516 = vmatprep.subr.bf16.mxu0 0
    %517 = vmatpush2.bf16.msra.mxu0 0
    %518 = vmatprep.subr.bf16.mxu0 0
    %519 = vmatpush2.bf16.msra.mxu0 0
    %520 = vmatprep.subr.bf16.mxu0 0
    %521 = vmatpush2.bf16.msra.mxu0 0
    %522 = vmatprep.subr.bf16.mxu0 0
    %523 = vmatpush2.bf16.msra.mxu0 0
    %524 = vmatprep.subr.bf16.mxu0 0
    %525 = vmatpush2.bf16.msra.mxu0 0
    %526 = vmatprep.subr.bf16.mxu0 0
    %527 = vmatpush2.bf16.msra.mxu0 0
    %528 = vmatprep.subr.bf16.mxu0 0
    %529 = vmatpush2.bf16.msra.mxu0 0
    %530 = vmatprep.mubr.bf16.mxu0 0
    %531 = vmatmul.mubr.bf16.gmra.mxu0 %v496
    %v532 = vpop.f32.mrf.mxu0
    %v533 = vadd.f32 0.0, %v532
    %v534 = vpop.f32.mrf.mxu0
    %v535 = vpop.f32.mrf.mxu0
    %v536 = vpop.f32.mrf.mxu0
    %537 = vdwg.mxu0
    %v538 = vadd.f32 %v123, %v533
    %v539 = vxor.u32 %v538, 2147483648
    %v540 = vmul.f32 %v539, 1.442695
    %v541 = vpow.pop %v540
    %v542 = vadd.f32 %v541, 1.0
    %v543 = vrcp.pop %v542
    %v544 = vmul.f32 1.0, %v543
    %v545 = vtanh.pop %v538
    %v546 = vmul.f32 %v544, %v484
    %548 = vrot.lane.b32.xlu0 %v545, 64
    %v549 = vpop.permute.xlu0 %548
    %v551 = vmul.f32 %v544, %v549
    %553 = vrot.lane.b32.xlu0 %v551, 32
    %v554 = vpop.permute.xlu0 %553
    %v556 = vadd.f32 %v546, %v554
    %v557 = vtanh.pop %v556
    %559 = vrot.lane.b32.xlu0 %v557, 64
    %v560 = vpop.permute.xlu0 %559
    %v562 = vmul.f32 %v544, %v560
    %v563 = vpack.c.bf16 %v562, %v562
    %565 = vrot.lane.b32.xlu0 %v563, 32
    %v566 = vpop.permute.xlu0 %565
    %v568 = vsel %vm134, %v566, 0
    %570 = vmatprep.subr.bf16.mxu0 0
    %571 = vmatpush1.bf16.msra.mxu0 0
    %572 = vmatprep.subr.bf16.mxu0 0
    %573 = vmatpush1.bf16.msra.mxu0 0
    %574 = vmatprep.subr.bf16.mxu0 0
    %575 = vmatpush1.bf16.msra.mxu0 0
    %576 = vmatprep.subr.bf16.mxu0 0
    %577 = vmatpush1.bf16.msra.mxu0 0
    %578 = vmatprep.subr.bf16.mxu0 0
    %579 = vmatpush1.bf16.msra.mxu0 0
    %580 = vmatprep.subr.bf16.mxu0 0
    %581 = vmatpush1.bf16.msra.mxu0 0
    %582 = vmatprep.subr.bf16.mxu0 0
    %583 = vmatpush1.bf16.msra.mxu0 %v38
    %584 = vmatprep.subr.bf16.mxu0 0
    %585 = vmatpush1.bf16.msra.mxu0 %v37
    %586 = vmatprep.subr.bf16.mxu0 0
    %587 = vmatpush2.bf16.msra.mxu0 0
    %588 = vmatprep.subr.bf16.mxu0 0
    %589 = vmatpush2.bf16.msra.mxu0 0
    %590 = vmatprep.subr.bf16.mxu0 0
    %591 = vmatpush2.bf16.msra.mxu0 0
    %592 = vmatprep.subr.bf16.mxu0 0
    %593 = vmatpush2.bf16.msra.mxu0 0
    %594 = vmatprep.subr.bf16.mxu0 0
    %595 = vmatpush2.bf16.msra.mxu0 0
    %596 = vmatprep.subr.bf16.mxu0 0
    %597 = vmatpush2.bf16.msra.mxu0 0
    %598 = vmatprep.subr.bf16.mxu0 0
    %599 = vmatpush2.bf16.msra.mxu0 0
    %600 = vmatprep.subr.bf16.mxu0 0
    %601 = vmatpush2.bf16.msra.mxu0 0
    %602 = vmatprep.mubr.bf16.mxu0 0
    %603 = vmatmul.mubr.bf16.gmra.mxu0 %v568
    %v604 = vpop.f32.mrf.mxu0
    %v605 = vadd.f32 0.0, %v604
    %v606 = vpop.f32.mrf.mxu0
    %v607 = vpop.f32.mrf.mxu0
    %v608 = vpop.f32.mrf.mxu0
    %609 = vdwg.mxu0
    %v610 = vadd.f32 %v128, %v605
    %v611 = vxor.u32 %v610, 2147483648
    %v612 = vmul.f32 %v611, 1.442695
    %v613 = vpow.pop %v612
    %v614 = vadd.f32 %v613, 1.0
    %v615 = vrcp.pop %v614
    %v616 = vmul.f32 1.0, %v615
    %v617 = vtanh.pop %v610
    %v618 = vmul.f32 %v616, %v556
    %620 = vrot.lane.b32.xlu0 %v617, 64
    %v621 = vpop.permute.xlu0 %620
    %v623 = vmul.f32 %v616, %v621
    %625 = vrot.lane.b32.xlu0 %v623, 32
    %v626 = vpop.permute.xlu0 %625
    %v628 = vadd.f32 %v618, %v626
    %v629 = vtanh.pop %v628
    %631 = vrot.lane.b32.xlu0 %v629, 64
    %v632 = vpop.permute.xlu0 %631
    %v634 = vmul.f32 %v616, %v632
    %v635 = vpack.c.bf16 %v634, %v634
    %637 = vrot.lane.b32.xlu0 %v635, 32
    %v638 = vpop.permute.xlu0 %637
    %v640 = vsel %vm134, %v638, 0
    %642 = vmatprep.subr.bf16.mxu0 0
    %643 = vmatpush1.bf16.msra.mxu0 0
    %644 = vmatprep.subr.bf16.mxu0 0
    %645 = vmatpush1.bf16.msra.mxu0 0
    %646 = vmatprep.subr.bf16.mxu0 0
    %647 = vmatpush1.bf16.msra.mxu0 0
    %648 = vmatprep.subr.bf16.mxu0 0
    %649 = vmatpush1.bf16.msra.mxu0 0
    %650 = vmatprep.subr.bf16.mxu0 0
    %651 = vmatpush1.bf16.msra.mxu0 0
    %652 = vmatprep.subr.bf16.mxu0 0
    %653 = vmatpush1.bf16.msra.mxu0 0
    %654 = vmatprep.subr.bf16.mxu0 0
    %655 = vmatpush1.bf16.msra.mxu0 %v38
    %656 = vmatprep.subr.bf16.mxu0 0
    %657 = vmatpush1.bf16.msra.mxu0 %v37
    %658 = vmatprep.subr.bf16.mxu0 0
    %659 = vmatpush2.bf16.msra.mxu0 0
    %660 = vmatprep.subr.bf16.mxu0 0
    %661 = vmatpush2.bf16.msra.mxu0 0
    %662 = vmatprep.subr.bf16.mxu0 0
    %663 = vmatpush2.bf16.msra.mxu0 0
    %664 = vmatprep.subr.bf16.mxu0 0
    %665 = vmatpush2.bf16.msra.mxu0 0
    %666 = vmatprep.subr.bf16.mxu0 0
    %667 = vmatpush2.bf16.msra.mxu0 0
    %668 = vmatprep.subr.bf16.mxu0 0
    %669 = vmatpush2.bf16.msra.mxu0 0
    %670 = vmatprep.subr.bf16.mxu0 0
    %671 = vmatpush2.bf16.msra.mxu0 0
    %672 = vmatprep.subr.bf16.mxu0 0
    %673 = vmatpush2.bf16.msra.mxu0 0
    %674 = vmatprep.mubr.bf16.mxu0 0
    %675 = vmatmul.mubr.bf16.gmra.mxu0 %v640
    %v676 = vpop.f32.mrf.mxu0
    %v677 = vadd.f32 0.0, %v676
    %v678 = vpop.f32.mrf.mxu0
    %v679 = vpop.f32.mrf.mxu0
    %v680 = vpop.f32.mrf.mxu0
    %681 = vdwg.mxu0
    %v682 = vadd.f32 %v131, %v677
    %v683 = vxor.u32 %v682, 2147483648
    %v684 = vmul.f32 %v683, 1.442695
    %v685 = vpow.pop %v684
    %v686 = vadd.f32 %v685, 1.0
    %v687 = vrcp.pop %v686
    %v688 = vmul.f32 1.0, %v687
    %v689 = vtanh.pop %v682
    %v690 = vmul.f32 %v688, %v628
    %692 = vrot.lane.b32.xlu0 %v689, 64
    %v693 = vpop.permute.xlu0 %692
    %v695 = vmul.f32 %v688, %v693
    %697 = vrot.lane.b32.xlu0 %v695, 32
    %v698 = vpop.permute.xlu0 %697
    %v700 = vadd.f32 %v690, %v698
    %v701 = vtanh.pop %v700
    %703 = vrot.lane.b32.xlu0 %v701, 64
    %v704 = vpop.permute.xlu0 %703
    %v706 = vmul.f32 %v688, %v704
    %v707 = vld [vmem:[#allocation2] sm:$0xff]
    %v708 = vld [vmem:[#allocation2 + $0x10] sm:$0xff]
    %v709 = vld [vmem:[#allocation2 + $0x20] sm:$0xff]
    %v710 = vld [vmem:[#allocation2 + $0x30] sm:$0xff]
    %v711 = vld [vmem:[#allocation2 + $0x40] ss:$0 sm:$0xff]
    %v712 = vld [vmem:[#allocation2 + $0x50] sm:$0xff]
    %v713 = vld [vmem:[#allocation2 + $0x58] sm:$0xff]
    %v714 = vld [vmem:[#allocation2 + $0x60] sm:$0xff]
    %v715 = vld [vmem:[#allocation2 + $0x68] sm:$0xff]
    %v716 = vld [vmem:[#allocation2 + $0x70] sm:$0xff]
    %v717 = vld [vmem:[#allocation2 + $0x78] sm:$0xff]
    %v718 = vld [vmem:[#allocation2 + $0x80] sm:$0xff]
    %v719 = vld [vmem:[#allocation2 + $0x88] sm:$0xff]
    %v720 = vld [vmem:[#allocation2 + $0x90] sm:$0xff]
    %v721 = vld [vmem:[#allocation2 + $0x98] sm:$0xff]
    %v722 = vld [vmem:[#allocation2 + $0xa0] sm:$0xff]
    %v723 = vld [vmem:[#allocation2 + $0xa8] sm:$0xff]
    %v724 = vld [vmem:[#allocation2 + $0xb0] sm:$0xff]
    %v725 = vld [vmem:[#allocation2 + $0xb8] sm:$0xff]
    %v726 = vld [vmem:[#allocation2 + $0xc0] sm:$0xff]
    %v727 = vld [vmem:[#allocation2 + $0xc8] sm:$0xff]
    %v728 = vld [vmem:[#allocation2 + $0xd0] sm:$0xff]
    %v729 = vld [vmem:[#allocation2 + $0xd8] sm:$0xff]
    %v730 = vld [vmem:[#allocation2 + $0xe0] sm:$0xff]
    %v731 = vld [vmem:[#allocation2 + $0xe8] sm:$0xff]
    %v732 = vld [vmem:[#allocation2 + $0xf0] sm:$0xff]
    %v733 = vld [vmem:[#allocation2 + $0xf8] sm:$0xff]
    %v734 = vld [vmem:[#allocation2 + $0x100] sm:$0xff]
    %v735 = vld [vmem:[#allocation2 + $0x108] sm:$0xff]
    %v736 = vld [vmem:[#allocation2 + $0x110] sm:$0xff]
    %v737 = vld [vmem:[#allocation2 + $0x118] sm:$0xff]
    %v738 = vld [vmem:[#allocation2 + $0x120] sm:$0xff]
    %v739 = vld [vmem:[#allocation2 + $0x128] sm:$0xff]
    %v740 = vld [vmem:[#allocation2 + $0x130] sm:$0xff]
    %v741 = vld [vmem:[#allocation2 + $0x138] sm:$0xff]
    %v742 = vld [vmem:[#allocation2 + $0x140] sm:$0xff]
    %v743 = vld [vmem:[#allocation2 + $0x148] sm:$0xff]
    %s744 = scalar_lea.vmem [#allocation2], 336
    %v745 = vld [vmem:[%s744] ss:$8 sm:$0x3]
    %747 = vrot.lane.b32.xlu0 %v706, 32
    %v748 = vpop.permute.xlu0 %747
    %v749 = vsel %vm134, %v748, 0
    %751 = vmatprep.subr.mxu0 0.0
    %752 = vmatpush1.msra.mxu0 0.0
    %753 = vmatprep.subr.mxu0 0.0
    %754 = vmatpush1.msra.mxu0 0.0
    %755 = vmatprep.subr.mxu0 0.0
    %756 = vmatpush1.msra.mxu0 0.0
    %757 = vmatprep.subr.mxu0 0.0
    %758 = vmatpush1.msra.mxu0 0.0
    %759 = vmatprep.subr.mxu0 0.0
    %760 = vmatpush1.msra.mxu0 0.0
    %761 = vmatprep.subr.mxu0 0.0
    %762 = vmatpush1.msra.mxu0 0.0
    %763 = vmatprep.subr.mxu0 0.0
    %764 = vmatpush1.msra.mxu0 0.0
    %765 = vmatprep.subr.mxu0 0.0
    %766 = vmatpush1.msra.mxu0 0.0
    %767 = vmatprep.subr.mxu0 0.0
    %768 = vmatpush1.msra.mxu0 0.0
    %769 = vmatprep.subr.mxu0 0.0
    %770 = vmatpush1.msra.mxu0 0.0
    %771 = vmatprep.subr.mxu0 0.0
    %772 = vmatpush1.msra.mxu0 0.0
    %773 = vmatprep.subr.mxu0 0.0
    %774 = vmatpush1.msra.mxu0 0.0
    %775 = vmatprep.subr.mxu0 0.0
    %776 = vmatpush1.msra.mxu0 %v710
    %777 = vmatprep.subr.mxu0 0.0
    %778 = vmatpush1.msra.mxu0 %v709
    %779 = vmatprep.subr.mxu0 0.0
    %780 = vmatpush1.msra.mxu0 %v708
    %781 = vmatprep.subr.mxu0 0.0
    %782 = vmatpush1.msra.mxu0 %v707
    %783 = vmatprep.subr.mxu0 0.0
    %784 = vmatpush2.msra.mxu0 0.0
    %785 = vmatprep.subr.mxu0 0.0
    %786 = vmatpush2.msra.mxu0 0.0
    %787 = vmatprep.subr.mxu0 0.0
    %788 = vmatpush2.msra.mxu0 0.0
    %789 = vmatprep.subr.mxu0 0.0
    %790 = vmatpush2.msra.mxu0 0.0
    %791 = vmatprep.subr.mxu0 0.0
    %792 = vmatpush2.msra.mxu0 0.0
    %793 = vmatprep.subr.mxu0 0.0
    %794 = vmatpush2.msra.mxu0 0.0
    %795 = vmatprep.subr.mxu0 0.0
    %796 = vmatpush2.msra.mxu0 0.0
    %797 = vmatprep.subr.mxu0 0.0
    %798 = vmatpush2.msra.mxu0 0.0
    %799 = vmatprep.subr.mxu0 0.0
    %800 = vmatpush2.msra.mxu0 0.0
    %801 = vmatprep.subr.mxu0 0.0
    %802 = vmatpush2.msra.mxu0 0.0
    %803 = vmatprep.subr.mxu0 0.0
    %804 = vmatpush2.msra.mxu0 0.0
    %805 = vmatprep.subr.mxu0 0.0
    %806 = vmatpush2.msra.mxu0 0.0
    %807 = vmatprep.subr.mxu0 0.0
    %808 = vmatpush2.msra.mxu0 0.0
    %809 = vmatprep.subr.mxu0 0.0
    %810 = vmatpush2.msra.mxu0 0.0
    %811 = vmatprep.subr.mxu0 0.0
    %812 = vmatpush2.msra.mxu0 0.0
    %813 = vmatprep.subr.mxu0 0.0
    %814 = vmatpush2.msra.mxu0 0.0
    %815 = vmatprep.mubr.f32.mxu0 0.0
    %816 = vmatmul.mubr.f32.gmra.mxu0 %v749
    %v817 = vpop.f32.mrf.mxu0
    %v818 = vadd.f32 %v711, %v817
    %v819 = vpop.f32.mrf.mxu0
    %820 = vdwg.mxu0
    %v821 = vmax.f32 %v818, 0.0
    %v823 = vlaneseq
    %v824 = vshrl.u32 %v823, 7
    %v825 = vsub.s32 0, %v824
    %v826 = vrot.slane %v745, %v825
    %v827 = vlaneseq
    %v828 = vshrl.u32 %v827, 7
    %v829 = vsub.s32 1, %v828
    %v830 = vrot.slane %v745, %v829
    %833 = vmatprep.subr.mxu0 %v743
    %834 = vmatpush1.msra.mxu0 %v742
    %835 = vmatprep.subr.mxu0 %v741
    %836 = vmatpush1.msra.mxu0 %v740
    %837 = vmatprep.subr.mxu0 %v739
    %838 = vmatpush1.msra.mxu0 %v738
    %839 = vmatprep.subr.mxu0 %v737
    %840 = vmatpush1.msra.mxu0 %v736
    %841 = vmatprep.subr.mxu0 %v735
    %842 = vmatpush1.msra.mxu0 %v734
    %843 = vmatprep.subr.mxu0 %v733
    %844 = vmatpush1.msra.mxu0 %v732
    %845 = vmatprep.subr.mxu0 %v731
    %846 = vmatpush1.msra.mxu0 %v730
    %847 = vmatprep.subr.mxu0 %v729
    %848 = vmatpush1.msra.mxu0 %v728
    %849 = vmatprep.subr.mxu0 %v727
    %850 = vmatpush1.msra.mxu0 %v726
    %851 = vmatprep.subr.mxu0 %v725
    %852 = vmatpush1.msra.mxu0 %v724
    %853 = vmatprep.subr.mxu0 %v723
    %854 = vmatpush1.msra.mxu0 %v722
    %855 = vmatprep.subr.mxu0 %v721
    %856 = vmatpush1.msra.mxu0 %v720
    %857 = vmatprep.subr.mxu0 %v719
    %858 = vmatpush1.msra.mxu0 %v718
    %859 = vmatprep.subr.mxu0 %v717
    %860 = vmatpush1.msra.mxu0 %v716
    %861 = vmatprep.subr.mxu0 %v715
    %862 = vmatpush1.msra.mxu0 %v714
    %863 = vmatprep.subr.mxu0 %v713
    %864 = vmatpush1.msra.mxu0 %v712
    %865 = vmatprep.subr.mxu0 0.0
    %866 = vmatpush2.msra.mxu0 0.0
    %867 = vmatprep.subr.mxu0 0.0
    %868 = vmatpush2.msra.mxu0 0.0
    %869 = vmatprep.subr.mxu0 0.0
    %870 = vmatpush2.msra.mxu0 0.0
    %871 = vmatprep.subr.mxu0 0.0
    %872 = vmatpush2.msra.mxu0 0.0
    %873 = vmatprep.subr.mxu0 0.0
    %874 = vmatpush2.msra.mxu0 0.0
    %875 = vmatprep.subr.mxu0 0.0
    %876 = vmatpush2.msra.mxu0 0.0
    %877 = vmatprep.subr.mxu0 0.0
    %878 = vmatpush2.msra.mxu0 0.0
    %879 = vmatprep.subr.mxu0 0.0
    %880 = vmatpush2.msra.mxu0 0.0
    %881 = vmatprep.subr.mxu0 0.0
    %882 = vmatpush2.msra.mxu0 0.0
    %883 = vmatprep.subr.mxu0 0.0
    %884 = vmatpush2.msra.mxu0 0.0
    %885 = vmatprep.subr.mxu0 0.0
    %886 = vmatpush2.msra.mxu0 0.0
    %887 = vmatprep.subr.mxu0 0.0
    %888 = vmatpush2.msra.mxu0 0.0
    %889 = vmatprep.subr.mxu0 0.0
    %890 = vmatpush2.msra.mxu0 0.0
    %891 = vmatprep.subr.mxu0 0.0
    %892 = vmatpush2.msra.mxu0 0.0
    %893 = vmatprep.subr.mxu0 0.0
    %894 = vmatpush2.msra.mxu0 0.0
    %895 = vmatprep.subr.mxu0 0.0
    %896 = vmatpush2.msra.mxu0 0.0
    %897 = vmatprep.mubr.f32.mxu0 0.0
    %898 = vmatmul.mubr.f32.gmra.mxu0 %v821
    %v899 = vpop.f32.mrf.mxu0
    %v900 = vadd.f32 %v826, %v899
    %v901 = vpop.f32.mrf.mxu0
    %v902 = vadd.f32 %v830, %v901
    %903 = vdwg.mxu0
    %904 = vst [vmem:[#allocation5] sm:$0xff] %v900
    %905 = vst [vmem:[#allocation5 + $0x8] sm:$0xff] %v902
    // Predicated region
    $region18: #{tpu_custom_call.1} parent=1 // pred_check
      _
    $region19: #{tpu_custom_call.1} parent=1 // pred_check_branch
      %907 = sbr.rel (0) target = $region21
    $region20: #{tpu_custom_call.1} parent=1 // pred_region
      %s909 = ssub.s32 256, 256
      %910 = vsyncadd [#allocation4], %s909
      %s912 = sshll.u32 [#allocation5], 4
      %s913 = int_to_ptr.vmem [resolvable:$true] %s912
      %915 = dma.vmem_to_hbm [thread:$0]  %s913, 256, %s3, [#allocation4]
    $region21: #{tpu_custom_call.1} parent=1 // pred_fallthru
      _
    // Predicated region
    $region22: #{tpu_custom_call.1} parent=1 // pred_check
      _
    $region23: #{tpu_custom_call.1} parent=1 // pred_check_branch
      %917 = sbr.rel (0) target = $region25
    $region24: #{tpu_custom_call.1} parent=1 // pred_region
      %918 = dma.done [#allocation4], 256
    $region25: #{tpu_custom_call.1} parent=1 // pred_fallthru
      _
    %919 = vsyncpa [#allocation3], 1
    %920 = vsyncpa [#allocation4], 1

</llo_original>
